<compile_context>
chip_gen: v7x
topology: tpu7x:2x2x1
jax: 0.10.0
libtpu: 0.0.40
codegen_flags: <defaults>
</compile_context>

<pallas_src>
import functools

import jax
import jax.numpy as jnp
from jax import lax
from jax.experimental import pallas as pl
from jax.experimental.pallas import tpu as pltpu


def _next_pow2(x):
    p = 1
    while p < x:
        p *= 2
    return p


def _fold_reduce_lanes(tt, k, c_pad):
    """All-reduce across the k fold slots of a (1, k*c_pad) lane-folded vector.

    After log2(k) roll-adds every lane holds the total for its class
    (lane % c_pad), i.e. the per-class sum replicated across fold slots.
    """
    shift = c_pad
    while shift < k * c_pad:
        tt = tt + pltpu.roll(tt, shift=shift, axis=1)
        shift *= 2
    return tt


# ---------------------------------------------------------------------------
# Fused single-pass kernel (folded target fits VMEM): one read of target.
# ---------------------------------------------------------------------------
def _fused_kernel(t_ref, c_ref, z_ref, avg_ref, w_ref, tt_ref, *, k, c_pad, n_valid):
    t = t_ref[...]
    tt = jnp.sum(t, axis=0, keepdims=True)          # folded column sums (1, C_f)
    tt = _fold_reduce_lanes(tt, k, c_pad)           # per-class totals, lane-tiled
    counts_new = c_ref[...] + tt
    zero_new = z_ref[...] + (n_valid - tt)
    recip_c = avg_ref[...] / counts_new
    recip_z = avg_ref[...] / zero_new
    w_ref[...] = jnp.where(t == 0.0, recip_z, recip_c)
    tt_ref[...] = tt


# ---------------------------------------------------------------------------
# Fused two-pass kernel for large N: grid = (2, n_tiles).
#   p == 0 : accumulate column sums into resident scratch (masked partial tile)
#   p == 1, i == 0 : finalize per-class reciprocals into scratch
#   p == 1 : stream weights tiles
# ---------------------------------------------------------------------------
def _two_pass_kernel(t_ref, c_ref, z_ref, avg_ref, w_ref, tt_ref,
                     acc_ref, rz_ref, rc_ref, *, k, c_pad, n_valid, rows, tile_rows):
    p = pl.program_id(0)
    i = pl.program_id(1)

    @pl.when((p == 0) & (i == 0))
    def _init():
        acc_ref[...] = jnp.zeros_like(acc_ref)

    @pl.when(p == 0)
    def _accumulate():
        t = t_ref[...]
        if rows % tile_rows != 0:
            # trailing partial tile: OOB block rows are undefined -> mask them
            valid = rows - i * tile_rows
            rid = lax.broadcasted_iota(jnp.int32, t.shape, 0)
            t = jnp.where(rid < valid, t, 0.0)
        # TODO(synk): an (8, C_f) accumulator (reshape + axis-0 sum) would keep
        # the hot loop on pure VPU adds; kept as a plain column sum for
        # lowering robustness (this pass is HBM-bound either way).
        acc_ref[...] += jnp.sum(t, axis=0, keepdims=True)

    @pl.when((p == 1) & (i == 0))
    def _finalize_counts():
        tt = _fold_reduce_lanes(acc_ref[...], k, c_pad)
        counts_new = c_ref[...] + tt
        zero_new = z_ref[...] + (n_valid - tt)
        rc_ref[...] = avg_ref[...] / counts_new
        rz_ref[...] = avg_ref[...] / zero_new
        tt_ref[...] = tt

    @pl.when(p == 1)
    def _emit_weights():
        w_ref[...] = jnp.where(t_ref[...] == 0.0, rz_ref[...], rc_ref[...])


@functools.partial(jax.jit,
                   static_argnames=("tile_rows", "fused_max_bytes", "force_two_pass"))
def balance_labels_forward(inputs, target, counts, zerocounts, total, *,
                           tile_rows=8192, fused_max_bytes=16 * 1024 * 1024,
                           force_two_pass=False):
    """Returns (out, weights, new_counts, new_zerocounts, new_total)."""
    N, C = target.shape
    if target.dtype != jnp.float32:
        # TODO(synk): DMA bool/int8/bf16 targets in their native dtype and
        # upcast in-kernel to cut the dominant HBM read traffic 2-4x.
        target = target.astype(jnp.float32)

    # ---- lane folding: present a lane-dense (128 wide) last dim -------------
    if C <= 128:
        c_pad = _next_pow2(C)            # smallest power of two >= C (divides 128)
        k = 128 // c_pad                 # rows folded into the lane dimension
    else:
        c_pad, k = C, 1
    c_f = c_pad * k

    tgt = target
    if c_pad != C:                       # awkward class count: pad classes
        tgt = jnp.pad(tgt, ((0, 0), (0, c_pad - C)))
    n_p = -(-N // k) * k                 # pad rows only to a multiple of k
    if n_p != N:
        tgt = jnp.pad(tgt, ((0, n_p - N), (0, 0)))
    rows = n_p // k
    t_f = tgt.reshape(rows, c_f)         # free (row-major) lane-folded view

    # ---- tiny per-class state, tiled into the folded lane layout ------------
    if c_pad != C:
        counts_p = jnp.pad(counts, ((0, 0), (0, c_pad - C)), constant_values=1.0)
        zero_p = jnp.pad(zerocounts, ((0, 0), (0, c_pad - C)), constant_values=1.0)
    else:
        counts_p, zero_p = counts, zerocounts
    counts_f = jnp.tile(counts_p, (1, k))                       # (1, C_f)
    zero_f = jnp.tile(zero_p, (1, k))                           # (1, C_f)
    n_f = jnp.float32(N)
    avg = (total[0, 0] + n_f) * jnp.float32(0.5)
    avg_f = jnp.full((1, c_f), avg, jnp.float32)                # (1, C_f)

    out_shapes = (jax.ShapeDtypeStruct((rows, c_f), jnp.float32),   # weights (folded)
                  jax.ShapeDtypeStruct((1, c_f), jnp.float32))      # batch tt (tiled)

    use_fused = (not force_two_pass) and (2 * rows * c_f * 4 <= fused_max_bytes)

    if use_fused:
        w_f, tt_f = pl.pallas_call(
            functools.partial(_fused_kernel, k=k, c_pad=c_pad, n_valid=float(N)),
            out_shape=out_shapes,
            compiler_params=pltpu.CompilerParams(
                vmem_limit_bytes=48 * 1024 * 1024),
        )(t_f, counts_f, zero_f, avg_f)
    else:
        tile_rows = max(8, (tile_rows // 8) * 8)
        n_tiles = pl.cdiv(rows, tile_rows)
        kernel = functools.partial(_two_pass_kernel, k=k, c_pad=c_pad,
                                   n_valid=float(N), rows=rows, tile_rows=tile_rows)
        w_f, tt_f = pl.pallas_call(
            kernel,
            out_shape=out_shapes,
            grid=(2, n_tiles),
            in_specs=[pl.BlockSpec((tile_rows, c_f), lambda p, i: (i, 0)),
                      pl.BlockSpec((1, c_f), lambda p, i: (0, 0)),
                      pl.BlockSpec((1, c_f), lambda p, i: (0, 0)),
                      pl.BlockSpec((1, c_f), lambda p, i: (0, 0))],
            out_specs=(pl.BlockSpec((tile_rows, c_f), lambda p, i: (p * i, 0)),
                       pl.BlockSpec((1, c_f), lambda p, i: (0, 0))),
            scratch_shapes=[pltpu.VMEM((1, c_f), jnp.float32),   # acc
                            pltpu.VMEM((1, c_f), jnp.float32),   # recip_z
                            pltpu.VMEM((1, c_f), jnp.float32)],  # recip_c
            compiler_params=pltpu.CompilerParams(
                dimension_semantics=("arbitrary", "arbitrary"),
                vmem_limit_bytes=48 * 1024 * 1024),
        )(t_f, counts_f, zero_f, avg_f)
        # TODO(synk): on v7x (2 TCs) this fused two-pass grid is fully
        # sequential; a per-core split of pass 0 would roughly double its
        # throughput there at the cost of un-fusing the phases.

    # ---- O(C) state update / unfold (XLA glue, negligible) ------------------
    tt = tt_f[:, :C]                     # per-class positives in this batch
    new_counts = counts + tt
    new_zero = zerocounts + (n_f - tt)
    new_total = total + n_f
    weights = w_f.reshape(n_p, c_pad)[:N, :C]

    # ScaleGrad.forward is identity: `inputs` never touches a kernel.
    # TODO(synk): ScaleGrad.backward (grad_output * weights) belongs in a
    # custom_vjp; returning recip_c/recip_z ((1,C) each) instead of the dense
    # weights and fusing the select into the backward kernel would remove the
    # NxC write here and the NxC read there.
    return inputs, weights, new_counts, new_zero, new_total


class BalanceLabels:
    """JAX/Pallas port of the stateful PyTorch BalanceLabels module."""

    def __init__(self, num_classes):
        self.counts = jnp.zeros((1, num_classes), jnp.float32)
        self.zerocounts = jnp.zeros((1, num_classes), jnp.float32)
        self.total = jnp.zeros((1, 1), jnp.float32)

    def __call__(self, inputs, target):
        out, weights, self.counts, self.zerocounts, self.total = (
            balance_labels_forward(inputs, target, self.counts,
                                   self.zerocounts, self.total))
        return out, weights


# ---------------------------------------------------------------------------
# Pure-JAX reference mirroring the PyTorch module.
# ---------------------------------------------------------------------------
def _ref_forward(inputs, target, counts, zerocounts, total):
    n = target.shape[0]
    tt = target.sum(0, keepdims=True)
    counts = counts + tt
    zerocounts = zerocounts + (n - tt)
    total = total + float(n)
    avg = total / 2.0
    denom = jnp.where(target == 0.0, zerocounts, counts)
    return inputs, avg / denom, counts, zerocounts, total


def _check_case(key, n, c, calls, **kwargs):
    keys = jax.random.split(key, calls + 1)
    inputs = jax.random.normal(keys[0], (n, c), dtype=jnp.float32)
    state = [jnp.zeros((1, c), jnp.float32),
             jnp.zeros((1, c), jnp.float32),
             jnp.zeros((1, 1), jnp.float32)]
    ref_state = list(state)
    for kk in keys[1:]:
        target = jax.random.bernoulli(kk, 0.5, (n, c)).astype(jnp.float32)
        out, w, *state = balance_labels_forward(inputs, target, *state, **kwargs)
        ref_out, ref_w, *ref_state = _ref_forward(inputs, target, *ref_state)
        jax.block_until_ready((out, w))
        assert jnp.allclose(out, ref_out), "forward output mismatch"
        assert jnp.allclose(w, ref_w, rtol=1e-6, atol=1e-6), "weights mismatch"
        for a, b, name in zip(state, ref_state, ("counts", "zerocounts", "total")):
            assert jnp.allclose(a, b), f"{name} mismatch"


if __name__ == "__main__":
    key = jax.random.PRNGKey(0)
    k1, k2, k3, k4 = jax.random.split(key, 4)

    # 1) module-style usage on the fused single-pass path (lane-folded small batch)
    N, C = 8, 16
    inputs = jax.random.normal(k1, (N, C), dtype=jnp.float32)
    module = BalanceLabels(C)
    rc = jnp.zeros((1, C), jnp.float32)
    rz = jnp.zeros((1, C), jnp.float32)
    rt = jnp.zeros((1, 1), jnp.float32)
    for kk in jax.random.split(k2, 2):                 # exercise running state
        target = jax.random.bernoulli(kk, 0.5, (N, C)).astype(jnp.float32)
        out, w = module(inputs, target)
        ref_out, ref_w, rc, rz, rt = _ref_forward(inputs, target, rc, rz, rt)
        jax.block_until_ready((out, w))
        assert jnp.allclose(out, ref_out), "forward output mismatch"
        assert jnp.allclose(w, ref_w, rtol=1e-6, atol=1e-6), "weights mismatch"
        assert jnp.allclose(module.counts, rc), "counts mismatch"
        assert jnp.allclose(module.zerocounts, rz), "zerocounts mismatch"
        assert jnp.allclose(module.total, rt), "total mismatch"

    # 2) fused two-pass path: multiple tiles, trailing partial tile + row padding
    _check_case(k3, 203, 16, 2, tile_rows=8, force_two_pass=True)

    # 3) class count that does not divide 128 (columns padded to 16 lanes)
    _check_case(k4, 40, 10, 1)

    print("KERNEL_OK")
</pallas_src>

<mosaic_0001>
module attributes {stable_mosaic.version = 11 : i64} {
  func.func @_fused_kernel(%arg0: memref<1x128xf32, #tpu.memory_space<vmem>>, %arg1: memref<1x128xf32, #tpu.memory_space<vmem>>, %arg2: memref<1x128xf32, #tpu.memory_space<vmem>>, %arg3: memref<1x128xf32, #tpu.memory_space<vmem>>, %arg4: memref<1x128xf32, #tpu.memory_space<vmem>>, %arg5: memref<1x128xf32, #tpu.memory_space<vmem>>) attributes {dimension_semantics = [], scalar_prefetch = 0 : i64, scratch_operands = 0 : i64, tpu.core_type = #tpu.core_type<tc>} {
    %c0 = arith.constant 0 : index
    %c0_0 = arith.constant 0 : index
    %0 = vector.load %arg0[%c0, %c0_0] : memref<1x128xf32, #tpu.memory_space<vmem>>, vector<1x128xf32>
    %cst = arith.constant dense<0.000000e+00> : vector<128xf32>
    %1 = vector.multi_reduction <add>, %0, %cst [0] : vector<1x128xf32> to vector<128xf32>
    %2 = vector.shape_cast %1 : vector<128xf32> to vector<1x128xf32>
    %c16_i32 = arith.constant 16 : i32
    %3 = tpu.dynamic_rotate %2 by %c16_i32 dim 1 : vector<1x128xf32>, i32 -> vector<1x128xf32>
    %4 = arith.addf %2, %3 : vector<1x128xf32>
    %c32_i32 = arith.constant 32 : i32
    %5 = tpu.dynamic_rotate %4 by %c32_i32 dim 1 : vector<1x128xf32>, i32 -> vector<1x128xf32>
    %6 = arith.addf %4, %5 : vector<1x128xf32>
    %c64_i32 = arith.constant 64 : i32
    %7 = tpu.dynamic_rotate %6 by %c64_i32 dim 1 : vector<1x128xf32>, i32 -> vector<1x128xf32>
    %8 = arith.addf %6, %7 : vector<1x128xf32>
    %c0_1 = arith.constant 0 : index
    %c0_2 = arith.constant 0 : index
    %9 = vector.load %arg1[%c0_1, %c0_2] : memref<1x128xf32, #tpu.memory_space<vmem>>, vector<1x128xf32>
    %10 = arith.addf %9, %8 : vector<1x128xf32>
    %c0_3 = arith.constant 0 : index
    %c0_4 = arith.constant 0 : index
    %11 = vector.load %arg2[%c0_3, %c0_4] : memref<1x128xf32, #tpu.memory_space<vmem>>, vector<1x128xf32>
    %cst_5 = arith.constant 8.000000e+00 : f32
    %12 = vector.broadcast %cst_5 : f32 to vector<1x128xf32>
    %13 = arith.subf %12, %8 : vector<1x128xf32>
    %14 = arith.addf %11, %13 : vector<1x128xf32>
    %c0_6 = arith.constant 0 : index
    %c0_7 = arith.constant 0 : index
    %15 = vector.load %arg3[%c0_6, %c0_7] : memref<1x128xf32, #tpu.memory_space<vmem>>, vector<1x128xf32>
    %16 = arith.divf %15, %10 : vector<1x128xf32>
    %c0_8 = arith.constant 0 : index
    %c0_9 = arith.constant 0 : index
    %17 = vector.load %arg3[%c0_8, %c0_9] : memref<1x128xf32, #tpu.memory_space<vmem>>, vector<1x128xf32>
    %18 = arith.divf %17, %14 : vector<1x128xf32>
    %cst_10 = arith.constant 0.000000e+00 : f32
    %19 = vector.broadcast %cst_10 : f32 to vector<1x128xf32>
    %20 = arith.cmpf oeq, %0, %19 : vector<1x128xf32>
    %21 = arith.select %20, %18, %16 : vector<1x128xi1>, vector<1x128xf32>
    %c0_11 = arith.constant 0 : index
    %c0_12 = arith.constant 0 : index
    %22 = vector.load %arg4[%c0_11, %c0_12] : memref<1x128xf32, #tpu.memory_space<vmem>>, vector<1x128xf32>
    tpu.vector_store %arg4[%c0_11, %c0_12], %21 {strides = array<i32>} : memref<1x128xf32, #tpu.memory_space<vmem>>, vector<1x128xf32>,
    %c0_13 = arith.constant 0 : index
    %c0_14 = arith.constant 0 : index
    %23 = vector.load %arg5[%c0_13, %c0_14] : memref<1x128xf32, #tpu.memory_space<vmem>>, vector<1x128xf32>
    tpu.vector_store %arg5[%c0_13, %c0_14], %8 {strides = array<i32>} : memref<1x128xf32, #tpu.memory_space<vmem>>, vector<1x128xf32>,
    return
  }
}

</mosaic_0001>

<llo_original>
// kernel: balance_labels_forward.1
$region0: #{balance_labels_forward.1}
  #allocation0 [shape = 'u32[]', space=smem, size = 0x4, offset = 0x4, fixed_abs, tag = 'smem constant byte address 0x4 - core index']
  #allocation1 [shape = 'u32[144,128]{1,0:T(1,128)}', space=vmem, size = 0x12000, scoped, tag = 'internal scratch']
  %s0 = inlined_call_operand.vmem [shape: f32[1,128], index: 0, kind: input, shape index: {}]
  %s1 = inlined_call_operand.vmem [shape: f32[1,128], index: 1, kind: input, shape index: {}]
  %s2 = inlined_call_operand.vmem [shape: f32[1,128], index: 2, kind: input, shape index: {}]
  %s3 = inlined_call_operand.vmem [shape: f32[1,128], index: 3, kind: input, shape index: {}]
  %s4 = inlined_call_operand.vmem [shape: f32[1,128], index: 4, kind: output, shape index: {0}]
  %s5 = inlined_call_operand.vmem [shape: f32[1,128], index: 5, kind: output, shape index: {1}]
  %6 = xla_tuple %s4, %s5
  %s7 = sld [smem:[#allocation0]]
  $region34: #{balance_labels_forward.1} parent=0
    _
  %s9 = ssub.s32 1, %s7
  %s10 = scalar_select 0, %s9, %s7
  // Predicated region
  $region2: #{balance_labels_forward.1} parent=0 // pred_check
    _
  $region3: #{balance_labels_forward.1} parent=0 // pred_check_branch
    %12 = sbr.rel (0) target = $region5
  $region4: #{balance_labels_forward.1} parent=0 // pred_region
    _
  $region5: #{balance_labels_forward.1} parent=0 // pred_fallthru
    _
  // Predicated region
  $region6: #{balance_labels_forward.1} parent=0 // pred_check
    _
  $region7: #{balance_labels_forward.1} parent=0 // pred_check_branch
    %14 = sbr.rel (0) target = $region9
  $region8: #{balance_labels_forward.1} parent=0 // pred_region
    _
  $region9: #{balance_labels_forward.1} parent=0 // pred_fallthru
    _
  // Predicated region
  $region10: #{balance_labels_forward.1} parent=0 // pred_check
    _
  $region11: #{balance_labels_forward.1} parent=0 // pred_check_branch
    %16 = sbr.rel (0) target = $region13
  $region12: #{balance_labels_forward.1} parent=0 // pred_region
    _
  $region13: #{balance_labels_forward.1} parent=0 // pred_fallthru
    _
  // Predicated region
  $region14: #{balance_labels_forward.1} parent=0 // pred_check
    _
  $region15: #{balance_labels_forward.1} parent=0 // pred_check_branch
    %18 = sbr.rel (0) target = $region17
  $region16: #{balance_labels_forward.1} parent=0 // pred_region
    _
  $region17: #{balance_labels_forward.1} parent=0 // pred_fallthru
    _
  %v19 = vld [vmem:[%s0] sm:$0x1]
  %v20 = vadd.f32 %v19, 0.0
  %21 = vrot.lane.b32.xlu0 %v20, 16
  %v22 = vpop.permute.xlu0 %21
  %v23 = vadd.f32 %v20, %v22
  %24 = vrot.lane.b32.xlu0 %v23, 32
  %v25 = vpop.permute.xlu0 %24
  %v26 = vadd.f32 %v23, %v25
  %27 = vrot.lane.b32.xlu0 %v26, 64
  %v28 = vpop.permute.xlu0 %27
  %v29 = vadd.f32 %v26, %v28
  %v30 = vld [vmem:[%s1] sm:$0x1]
  %v31 = vadd.f32 %v30, %v29
  %v32 = vld [vmem:[%s2] sm:$0x1]
  %v33 = vsub.f32 8.0, %v29
  %v34 = vadd.f32 %v32, %v33
  %v35 = vld [vmem:[%s3] sm:$0x1]
  %v36 = vrcp.pop %v31
  %v37 = vmul.f32 %v35, %v36
  %v38 = vrcp.pop %v34
  %v39 = vmul.f32 %v35, %v38
  %vm40 = vcmp.eq.f32.partialorder %v19, 0.0
  %v41 = vsel %vm40, %v39, %v37
  %42 = vst [vmem:[%s4] sm:$0x1] %v41
  %43 = vst [vmem:[%s5] sm:$0x1] %v29
  // Predicated region
  $region18: #{balance_labels_forward.1} parent=0 // pred_check
    _
  $region19: #{balance_labels_forward.1} parent=0 // pred_check_branch
    %45 = sbr.rel (0) target = $region21
  $region20: #{balance_labels_forward.1} parent=0 // pred_region
    _
  $region21: #{balance_labels_forward.1} parent=0 // pred_fallthru
    _
  // Predicated region
  $region22: #{balance_labels_forward.1} parent=0 // pred_check
    _
  $region23: #{balance_labels_forward.1} parent=0 // pred_check_branch
    %47 = sbr.rel (0) target = $region25
  $region24: #{balance_labels_forward.1} parent=0 // pred_region
    _
  $region25: #{balance_labels_forward.1} parent=0 // pred_fallthru
    _
  // Predicated region
  $region26: #{balance_labels_forward.1} parent=0 // pred_check
    _
  $region27: #{balance_labels_forward.1} parent=0 // pred_check_branch
    %49 = sbr.rel (0) target = $region29
  $region28: #{balance_labels_forward.1} parent=0 // pred_region
    _
  $region29: #{balance_labels_forward.1} parent=0 // pred_fallthru
    _
  // Predicated region
  $region30: #{balance_labels_forward.1} parent=0 // pred_check
    _
  $region31: #{balance_labels_forward.1} parent=0 // pred_check_branch
    %51 = sbr.rel (0) target = $region33
  $region32: #{balance_labels_forward.1} parent=0 // pred_region
    _
  $region33: #{balance_labels_forward.1} parent=0 // pred_fallthru
    _

</llo_original>
